<compile_context>
chip_gen: v7x
topology: tpu7x:2x2x1
jax: 0.10.0
libtpu: 0.0.40
codegen_flags: <defaults>
</compile_context>

<pallas_src>
import functools

import jax
import jax.numpy as jnp
import numpy as np
from jax import lax
from jax.experimental import pallas as pl
from jax.experimental.pallas import tpu as pltpu


def _round_up(x, m):
    return ((x + m - 1) // m) * m


# --------------------------------------------------------------------------
# Fused kernel: online softmax over pixels + weighted feature gather
# --------------------------------------------------------------------------
def _spatial_gather_kernel(probs_ref, feats_ref, o_ref, m_sc, l_sc, acc_sc, *,
                           sm_scale, p_valid, tp, need_mask):
    pi = pl.program_id(1)                       # pixel-tile index (reduction axis)

    @pl.when(pi == 0)
    def _init():
        m_sc[...] = jnp.full_like(m_sc, -jnp.inf)
        l_sc[...] = jnp.zeros_like(l_sc)
        acc_sc[...] = jnp.zeros_like(acc_sc)

    s = probs_ref[0].astype(jnp.float32)        # (K, tp) class logits for this tile
    if sm_scale != 1.0:                         # static: fold scale only when needed
        s = s * sm_scale
    if need_mask:                               # static: only when P was padded
        col = lax.broadcasted_iota(jnp.int32, s.shape, 1) + pi * tp
        s = jnp.where(col < p_valid, s, jnp.float32(-1e30))

    # Online softmax update over the pixel axis.
    m_prev = m_sc[...]                                                  # (K, 1)
    m_new = jnp.maximum(m_prev, jnp.max(s, axis=-1, keepdims=True))     # (K, 1)
    alpha = jnp.exp(m_prev - m_new)
    p = jnp.exp(s - m_new)                                              # (K, tp)
    l_sc[...] = alpha * l_sc[...] + jnp.sum(p, axis=-1, keepdims=True)

    f = feats_ref[0].astype(jnp.float32)        # (C, tp) features, native layout
    # acc[k, c] += sum_p p[k, p] * f[c, p]  — contract last dims, no transpose.
    acc_sc[...] = alpha * acc_sc[...] + lax.dot_general(
        p, f, dimension_numbers=(((1,), (1,)), ((), ())),
        preferred_element_type=jnp.float32)
    m_sc[...] = m_new

    @pl.when(pi == pl.num_programs(1) - 1)
    def _finalize():
        # Normalization is a once-per-batch op on (K, 1); exact reciprocal is free.
        inv_l = pl.reciprocal(l_sc[...], approx=False)
        o_ref[0] = (acc_sc[...] * inv_l).astype(o_ref.dtype)


# --------------------------------------------------------------------------
# Wrapper
# --------------------------------------------------------------------------
def spatial_gather(feats, probs, cls_num, scale=1, *, tp_max=512):
    """SpatialGatherModule.forward: (N,C,H,W),(N,K,H,W) -> (N,C,K,1)."""
    N, C, H, W = feats.shape
    Np, K, Hp, Wp = probs.shape
    assert Np == N and K == cls_num
    P = H * W
    assert Hp * Wp == P, "feats and probs must share the same spatial extent"

    probs_f = probs.reshape(N, K, P)            # (N, K, P)
    feats_f = feats.reshape(N, C, P)            # (N, C, P)  (no HBM transpose)

    tp = min(tp_max, _round_up(P, 128))         # 128-lane aligned pixel tile
    P_pad = _round_up(P, tp)
    need_mask = P_pad != P
    if need_mask:
        probs_f = jnp.pad(probs_f, ((0, 0), (0, 0), (0, P_pad - P)))
        feats_f = jnp.pad(feats_f, ((0, 0), (0, 0), (0, P_pad - P)))

    kern = functools.partial(
        _spatial_gather_kernel,
        sm_scale=float(scale), p_valid=P, tp=tp, need_mask=need_mask)

    ctx = pl.pallas_call(
        kern,
        out_shape=jax.ShapeDtypeStruct((N, K, C), feats.dtype),
        grid_spec=pltpu.PrefetchScalarGridSpec(
            num_scalar_prefetch=0,
            grid=(N, P_pad // tp),              # reduction (pixel) axis last
            in_specs=[
                pl.BlockSpec((1, K, tp), lambda n, p: (n, 0, p)),   # probs tile
                pl.BlockSpec((1, C, tp), lambda n, p: (n, 0, p)),   # feats tile
            ],
            # Constant block index across the pixel axis -> accumulator-resident.
            out_specs=pl.BlockSpec((1, K, C), lambda n, p: (n, 0, 0)),
            scratch_shapes=[
                pltpu.VMEM((K, 1), jnp.float32),    # running max
                pltpu.VMEM((K, 1), jnp.float32),    # running sum
                pltpu.VMEM((K, C), jnp.float32),    # context accumulator
            ],
        ),
        compiler_params=pltpu.CompilerParams(
            dimension_semantics=("parallel", "arbitrary")),
    )(probs_f, feats_f)

    # (N, K, C) -> (N, C, K, 1): cheap transpose of the tiny output only.
    return jnp.transpose(ctx, (0, 2, 1))[..., None]


# --------------------------------------------------------------------------
# Pure-JAX reference (same math) for a sanity check
# --------------------------------------------------------------------------
def _ref_spatial_gather(feats, probs, cls_num, scale=1):
    N, C, H, W = feats.shape
    K = cls_num
    probs_f = probs.reshape(N, K, -1)                         # (N, K, P)
    feats_f = jnp.transpose(feats.reshape(N, C, -1), (0, 2, 1))  # (N, P, C)
    probs_sm = jax.nn.softmax(scale * probs_f, axis=2)
    ctx = jnp.einsum("nkp,npc->nkc", probs_sm, feats_f)       # (N, K, C)
    return jnp.transpose(ctx, (0, 2, 1))[..., None]           # (N, C, K, 1)


if __name__ == "__main__":
    root = jax.random.PRNGKey(0)

    configs = [
        # (N, C, H,  W,  K, scale)
        (2, 4, 16, 16, 8, 1),   # aligned: P=256 == tp, single reduction step
        (2, 4, 18, 18, 8, 1),   # ragged:  P=324 -> padded to 384, masked tail
        (2, 4, 32, 32, 8, 2),   # multi-step reduction: P=1024 = two 512 tiles
    ]
    for (N, C, H, W, K, scale) in configs:
        kf, kp, root = jax.random.split(root, 3)
        feats = jax.random.normal(kf, (N, C, H, W), jnp.float32)
        probs = jax.random.normal(kp, (N, K, H, W), jnp.float32)

        out = jax.block_until_ready(spatial_gather(feats, probs, cls_num=K, scale=scale))
        assert out.shape == (N, C, K, 1), out.shape

        ref = jax.block_until_ready(_ref_spatial_gather(feats, probs, K, scale))
        np.testing.assert_allclose(np.asarray(out), np.asarray(ref),
                                   rtol=1e-4, atol=1e-4)

    print("KERNEL_OK")
</pallas_src>

<mosaic_0001>
module attributes {stable_mosaic.version = 11 : i64} {
  func.func @_spatial_gather_kernel(%arg0: i32, %arg1: i32, %arg2: memref<1x8x256xf32, #tpu.memory_space<vmem>>, %arg3: memref<1x4x256xf32, #tpu.memory_space<vmem>>, %arg4: memref<1x8x4xf32, #tpu.memory_space<vmem>>, %arg5: memref<8x1xf32, #tpu.memory_space<vmem>>, %arg6: memref<8x1xf32, #tpu.memory_space<vmem>>, %arg7: memref<8x4xf32, #tpu.memory_space<vmem>>) attributes {dimension_semantics = [#tpu.dimension_semantics<parallel>, #tpu.dimension_semantics<arbitrary>], iteration_bounds = array<i64: 2, 1>, scalar_prefetch = 0 : i64, scratch_operands = 3 : i64, tpu.core_type = #tpu.core_type<tc>, window_params = [{transform_indices = @transform_0, window_bounds = array<i64: 1, 8, 256>}, {transform_indices = @transform_1, window_bounds = array<i64: 1, 4, 256>}, {transform_indices = @transform_2, window_bounds = array<i64: 1, 8, 4>}]} {
    %c0_i32 = arith.constant 0 : i32
    %0 = arith.cmpi eq, %arg1, %c0_i32 : i32
    %1 = arith.extui %0 : i1 to i32
    %c0_i32_0 = arith.constant 0 : i32
    %2 = arith.cmpi ne, %1, %c0_i32_0 : i32
    scf.if %2 {
      %cst_22 = arith.constant 0xFF800000 : f32
      %32 = vector.broadcast %cst_22 : f32 to vector<8x1xf32>
      %c0_23 = arith.constant 0 : index
      %c0_24 = arith.constant 0 : index
      %33 = vector.load %arg5[%c0_23, %c0_24] : memref<8x1xf32, #tpu.memory_space<vmem>>, vector<8x1xf32>
      tpu.vector_store %arg5[%c0_23, %c0_24], %32 {strides = array<i32>} : memref<8x1xf32, #tpu.memory_space<vmem>>, vector<8x1xf32>,
      %cst_25 = arith.constant 0.000000e+00 : f32
      %34 = vector.broadcast %cst_25 : f32 to vector<8x1xf32>
      %c0_26 = arith.constant 0 : index
      %c0_27 = arith.constant 0 : index
      %35 = vector.load %arg6[%c0_26, %c0_27] : memref<8x1xf32, #tpu.memory_space<vmem>>, vector<8x1xf32>
      tpu.vector_store %arg6[%c0_26, %c0_27], %34 {strides = array<i32>} : memref<8x1xf32, #tpu.memory_space<vmem>>, vector<8x1xf32>,
      %cst_28 = arith.constant 0.000000e+00 : f32
      %36 = vector.broadcast %cst_28 : f32 to vector<8x4xf32>
      %c0_29 = arith.constant 0 : index
      %c0_30 = arith.constant 0 : index
      %37 = vector.load %arg7[%c0_29, %c0_30] : memref<8x4xf32, #tpu.memory_space<vmem>>, vector<8x4xf32>
      tpu.vector_store %arg7[%c0_29, %c0_30], %36 {strides = array<i32>} : memref<8x4xf32, #tpu.memory_space<vmem>>, vector<8x4xf32>,
    } else {
    }
    %c0 = arith.constant 0 : index
    %c0_1 = arith.constant 0 : index
    %c0_2 = arith.constant 0 : index
    %3 = vector.load %arg2[%c0, %c0_1, %c0_2] : memref<1x8x256xf32, #tpu.memory_space<vmem>>, vector<1x8x256xf32>
    %4 = vector.shape_cast %3 : vector<1x8x256xf32> to vector<8x256xf32>
    %c0_3 = arith.constant 0 : index
    %c0_4 = arith.constant 0 : index
    %5 = vector.load %arg5[%c0_3, %c0_4] : memref<8x1xf32, #tpu.memory_space<vmem>>, vector<8x1xf32>
    %cst = arith.constant dense<0xFF800000> : vector<8xf32>
    %6 = vector.multi_reduction <maximumf>, %4, %cst [1] : vector<8x256xf32> to vector<8xf32>
    %7 = vector.shape_cast %6 : vector<8xf32> to vector<8x1xf32>
    %8 = arith.maximumf %5, %7 : vector<8x1xf32>
    %9 = arith.subf %5, %8 : vector<8x1xf32>
    %10 = math.exp %9 : vector<8x1xf32>
    %11 = vector.broadcast %8 : vector<8x1xf32> to vector<8x256xf32>
    %12 = arith.subf %4, %11 : vector<8x256xf32>
    %13 = math.exp %12 : vector<8x256xf32>
    %c0_5 = arith.constant 0 : index
    %c0_6 = arith.constant 0 : index
    %14 = vector.load %arg6[%c0_5, %c0_6] : memref<8x1xf32, #tpu.memory_space<vmem>>, vector<8x1xf32>
    %15 = arith.mulf %10, %14 : vector<8x1xf32>
    %cst_7 = arith.constant dense<0.000000e+00> : vector<8xf32>
    %16 = vector.multi_reduction <add>, %13, %cst_7 [1] : vector<8x256xf32> to vector<8xf32>
    %17 = vector.shape_cast %16 : vector<8xf32> to vector<8x1xf32>
    %18 = arith.addf %15, %17 : vector<8x1xf32>
    %c0_8 = arith.constant 0 : index
    %c0_9 = arith.constant 0 : index
    %19 = vector.load %arg6[%c0_8, %c0_9] : memref<8x1xf32, #tpu.memory_space<vmem>>, vector<8x1xf32>
    tpu.vector_store %arg6[%c0_8, %c0_9], %18 {strides = array<i32>} : memref<8x1xf32, #tpu.memory_space<vmem>>, vector<8x1xf32>,
    %c0_10 = arith.constant 0 : index
    %c0_11 = arith.constant 0 : index
    %c0_12 = arith.constant 0 : index
    %20 = vector.load %arg3[%c0_10, %c0_11, %c0_12] : memref<1x4x256xf32, #tpu.memory_space<vmem>>, vector<1x4x256xf32>
    %21 = vector.shape_cast %20 : vector<1x4x256xf32> to vector<4x256xf32>
    %c0_13 = arith.constant 0 : index
    %c0_14 = arith.constant 0 : index
    %22 = vector.load %arg7[%c0_13, %c0_14] : memref<8x4xf32, #tpu.memory_space<vmem>>, vector<8x4xf32>
    %23 = vector.broadcast %10 : vector<8x1xf32> to vector<8x4xf32>
    %24 = arith.mulf %23, %22 : vector<8x4xf32>
    %cst_15 = arith.constant dense<0.000000e+00> : vector<8x4xf32>
    %25 = tpu.matmul %13, %21, %cst_15 {dimension_numbers = #tpu.dot_dimension_numbers<[1], [1], [0], [0], [0, 0, 1, 0], [], []>} : vector<8x256xf32>, vector<4x256xf32>, vector<8x4xf32> -> vector<8x4xf32>
    %26 = arith.addf %24, %25 : vector<8x4xf32>
    %c0_16 = arith.constant 0 : index
    %c0_17 = arith.constant 0 : index
    %27 = vector.load %arg7[%c0_16, %c0_17] : memref<8x4xf32, #tpu.memory_space<vmem>>, vector<8x4xf32>
    tpu.vector_store %arg7[%c0_16, %c0_17], %26 {strides = array<i32>} : memref<8x4xf32, #tpu.memory_space<vmem>>, vector<8x4xf32>,
    %c0_18 = arith.constant 0 : index
    %c0_19 = arith.constant 0 : index
    %28 = vector.load %arg5[%c0_18, %c0_19] : memref<8x1xf32, #tpu.memory_space<vmem>>, vector<8x1xf32>
    tpu.vector_store %arg5[%c0_18, %c0_19], %8 {strides = array<i32>} : memref<8x1xf32, #tpu.memory_space<vmem>>, vector<8x1xf32>,
    %c0_i32_20 = arith.constant 0 : i32
    %29 = arith.cmpi eq, %arg1, %c0_i32_20 : i32
    %30 = arith.extui %29 : i1 to i32
    %c0_i32_21 = arith.constant 0 : i32
    %31 = arith.cmpi ne, %30, %c0_i32_21 : i32
    scf.if %31 {
      %c0_22 = arith.constant 0 : index
      %c0_23 = arith.constant 0 : index
      %32 = vector.load %arg6[%c0_22, %c0_23] : memref<8x1xf32, #tpu.memory_space<vmem>>, vector<8x1xf32>
      %33 = tpu.reciprocal %32 : vector<8x1xf32> -> vector<8x1xf32>
      %c0_24 = arith.constant 0 : index
      %c0_25 = arith.constant 0 : index
      %34 = vector.load %arg7[%c0_24, %c0_25] : memref<8x4xf32, #tpu.memory_space<vmem>>, vector<8x4xf32>
      %35 = vector.broadcast %33 : vector<8x1xf32> to vector<8x4xf32>
      %36 = arith.mulf %34, %35 : vector<8x4xf32>
      %c0_26 = arith.constant 0 : index
      %c0_27 = arith.constant 0 : index
      %c0_28 = arith.constant 0 : index
      %37 = vector.load %arg4[%c0_26, %c0_27, %c0_28] : memref<1x8x4xf32, #tpu.memory_space<vmem>>, vector<1x8x4xf32>
      %38 = vector.shape_cast %37 : vector<1x8x4xf32> to vector<8x4xf32>
      %39 = vector.shape_cast %36 : vector<8x4xf32> to vector<1x8x4xf32>
      tpu.vector_store %arg4[%c0_26, %c0_27, %c0_28], %39 {strides = array<i32>} : memref<1x8x4xf32, #tpu.memory_space<vmem>>, vector<1x8x4xf32>,
    } else {
    }
    return
  }
  func.func @transform_0(%arg0: i32, %arg1: i32) -> (i32, i32, i32) {
    %c0_i32 = arith.constant 0 : i32
    %c0_i32_0 = arith.constant 0 : i32
    return %arg0, %c0_i32, %arg1 : i32, i32, i32
  }
  func.func @transform_1(%arg0: i32, %arg1: i32) -> (i32, i32, i32) {
    %c0_i32 = arith.constant 0 : i32
    %c0_i32_0 = arith.constant 0 : i32
    return %arg0, %c0_i32, %arg1 : i32, i32, i32
  }
  func.func @transform_2(%arg0: i32, %arg1: i32) -> (i32, i32, i32) {
    %c0_i32 = arith.constant 0 : i32
    %c0_i32_0 = arith.constant 0 : i32
    %c0_i32_1 = arith.constant 0 : i32
    return %arg0, %c0_i32, %c0_i32_0 : i32, i32, i32
  }
}

</mosaic_0001>

<llo_original>
// kernel: tpu_custom_call.1
$region0: #{tpu_custom_call.1}
  #allocation0 [shape = 'u32[]', space=smem, size = 0x4, offset = 0x4, fixed_abs, tag = 'smem constant byte address 0x4 - core index']
  #allocation1 [shape = 'u32[144,128]{1,0:T(1,128)}', space=vmem, size = 0x12000, scoped, tag = 'internal scratch']
  #allocation2 [shape = 'f32[8,1]{1,0:T(8,128)}', space=vmem, size = 0x1000, scoped, tag = 'scratch operand']
  #allocation3 [shape = 'f32[8,1]{1,0:T(8,128)}', space=vmem, size = 0x1000, scoped, tag = 'scratch operand']
  #allocation4 [shape = 'f32[8,4]{1,0:T(8,128)}', space=vmem, size = 0x1000, scoped, tag = 'scratch operand']
  %s0 = inlined_call_operand.hbm [shape: f32[2,8,256], index: 0, kind: input, shape index: {}]
  %s1 = inlined_call_operand.hbm [shape: f32[2,4,256], index: 1, kind: input, shape index: {}]
  %s2 = inlined_call_operand.vmem [shape: f32[2,8,4], index: 2, kind: output, shape index: {}]
  %s3 = sld [smem:[#allocation0]]
  $region57: #{tpu_custom_call.1} parent=0
    _
  %s5 = ssub.s32 1, %s3
  %s6 = scalar_select 0, %s5, %s3
  $region1: #{tpu_custom_call.1} parent=0
    #allocation5 [shape = 'u8[16384]{0}', space=vmem, size = 0x4000, scoped, tag = 'input window, operand 0']
    #allocation6 [shape = 's32[2]{0}', space=sflag, size = 0x8, scoped, tag = 'scoped memory for tpu_custom_call.1']
    #allocation7 [shape = 'u8[8192]{0}', space=vmem, size = 0x2000, scoped, tag = 'input window, operand 1']
    #allocation8 [shape = 's32[2]{0}', space=sflag, size = 0x8, scoped, tag = 'scoped memory for tpu_custom_call.1']
    %7 = vsyncpa [#allocation6], 0
    %s8 = scalar_lea.sflag [#allocation6], 1
    %9 = vsyncpa %s8, 0
    %10 = vsyncpa [#allocation8], 0
    %s11 = scalar_lea.sflag [#allocation8], 1
    %12 = vsyncpa %s11, 0
    loop: start=0, step=1, limit=4
    $region2: #{tpu_custom_call.1} parent=1 // loop_pre_header
      _
    $region3: #{tpu_custom_call.1} parent=1 // loop_header
      %s14 = sphi 0, %s18
      %p15 = scmp.ge.s32.totalorder %s14, 4
      %s21 = sphi 0, %s33
      %s22 = sphi 0, %s29
      %s23 = sphi 0, %s21
      %s24 = sphi 0, %s22
      %s25 = sphi 0, %s23
      %s26 = sphi 0, %s24
      %s38 = sphi 0, %s40
      %s41 = sphi 0, %s38
      %s42 = sphi 0, %s41
      %s58 = sphi 0, %s42
      %s66 = sphi 0, %s68
      %s69 = sphi 0, %s66
      %s70 = sphi 0, %s69
      %s86 = sphi 0, %s70
      %s92 = sphi 0, %s94
      %s95 = sphi 0, %s92
      %s96 = sphi 0, %s95
      %s112 = sphi 0, %s96
    $region4: #{tpu_custom_call.1} parent=1 // loop_header_branch
      %17 = sbr.rel (%p15) target = $region8
    $region5: #{tpu_custom_call.1} parent=1 // loop_body
      %s19 = ssub.s32 %s14, 1
      %s20 = ssub.s32 %s14, 2
      %s27 = sadd.s32 1, %s22
      %p28 = scmp.ge.s32.totalorder %s27, 1
      %s29 = scalar_select %p28, 0, %s27
      %s30 = sadd.s32 1, %s21
      %s31 = scalar_select %p28, %s30, %s21
      %p32 = scmp.ge.s32.totalorder %s31, 2
      %s33 = scalar_select %p32, 0, %s31
      %s34 = ssub.s32 %s21, %s33
      %s35 = ssub.s32 %s22, %s29
      %s36 = sor.u32 %s34, %s35
      %p37 = scmp.eq.s32.totalorder %s36, 0
      %s39 = sadd.s32 %s38, 1
      %s40 = scalar_select %p37, %s38, %s39
      %p43 = pneg %p37
      %p44 = scmp.eq.s32.totalorder %s14, 1
      %p45 = por %p43, %p44
      %p46 = scmp.ne.s32.totalorder %s38, %s41
      %p47 = scmp.eq.s32.totalorder %s14, 0
      %p48 = por %p46, %p47
      %p49 = scmp.ne.s32.totalorder %s38, %s41
      %p50 = scmp.eq.s32.totalorder %s19, 1
      %p51 = por %p49, %p50
      %p52 = scmp.ne.s32.totalorder %s41, %s42
      %p53 = scmp.eq.s32.totalorder %s19, 0
      %p54 = por %p52, %p53
      %p55 = scmp.ne.s32.totalorder %s41, %s42
      %p56 = scmp.eq.s32.totalorder %s20, 1
      %p57 = por %p55, %p56
      %p59 = scmp.ne.s32.totalorder %s42, %s58
      %p60 = scmp.eq.s32.totalorder %s20, 0
      %p61 = por %p59, %p60
      %s62 = ssub.s32 %s21, %s33
      %s63 = ssub.s32 %s22, %s29
      %s64 = sor.u32 %s62, %s63
      %p65 = scmp.eq.s32.totalorder %s64, 0
      %s67 = sadd.s32 %s66, 1
      %s68 = scalar_select %p65, %s66, %s67
      %p71 = pneg %p65
      %p72 = scmp.eq.s32.totalorder %s14, 1
      %p73 = por %p71, %p72
      %p74 = scmp.ne.s32.totalorder %s66, %s69
      %p75 = scmp.eq.s32.totalorder %s14, 0
      %p76 = por %p74, %p75
      %p77 = scmp.ne.s32.totalorder %s66, %s69
      %p78 = scmp.eq.s32.totalorder %s19, 1
      %p79 = por %p77, %p78
      %p80 = scmp.ne.s32.totalorder %s69, %s70
      %p81 = scmp.eq.s32.totalorder %s19, 0
      %p82 = por %p80, %p81
      %p83 = scmp.ne.s32.totalorder %s69, %s70
      %p84 = scmp.eq.s32.totalorder %s20, 1
      %p85 = por %p83, %p84
      %p87 = scmp.ne.s32.totalorder %s70, %s86
      %p88 = scmp.eq.s32.totalorder %s20, 0
      %p89 = por %p87, %p88
      %s90 = ssub.s32 %s21, %s33
      %p91 = scmp.eq.s32.totalorder %s90, 0
      %s93 = sadd.s32 %s92, 1
      %s94 = scalar_select %p91, %s92, %s93
      %p97 = pneg %p91
      %p98 = scmp.eq.s32.totalorder %s14, 1
      %p99 = por %p97, %p98
      %p100 = scmp.ne.s32.totalorder %s92, %s95
      %p101 = scmp.eq.s32.totalorder %s14, 0
      %p102 = por %p100, %p101
      %p103 = scmp.ne.s32.totalorder %s92, %s95
      %p104 = scmp.eq.s32.totalorder %s19, 1
      %p105 = por %p103, %p104
      %p106 = scmp.ne.s32.totalorder %s95, %s96
      %p107 = scmp.eq.s32.totalorder %s19, 0
      %p108 = por %p106, %p107
      %p109 = scmp.ne.s32.totalorder %s95, %s96
      %p110 = scmp.eq.s32.totalorder %s20, 1
      %p111 = por %p109, %p110
      %p113 = scmp.ne.s32.totalorder %s96, %s112
      %p114 = scmp.eq.s32.totalorder %s20, 0
      %p115 = por %p113, %p114
      %p116 = scmp.le.s32.totalorder 1, %s14
      %p117 = scmp.lt.s32.totalorder %s14, 3
      %p118 = pnand %p116, %p117
      %p119 = pneg %p118
      // Predicated region
      $region9: #{tpu_custom_call.1} parent=5 // pred_check
        _
      $region10: #{tpu_custom_call.1} parent=5 // pred_check_branch
        %121 = sbr.rel (%p118) target = $region12
      $region11: #{tpu_custom_call.1} parent=5 // pred_region
        %s122 = ssub.s32 %s14, 1
      $region12: #{tpu_custom_call.1} parent=5 // pred_fallthru
        _
      %p123 = scmp.lt.s32.totalorder %s14, 2
      // Predicated region
      $region13: #{tpu_custom_call.1} parent=5 // pred_check
        %p124 = pneg %p123
      $region14: #{tpu_custom_call.1} parent=5 // pred_check_branch
        %126 = sbr.rel (%p124) target = $region16
      $region15: #{tpu_custom_call.1} parent=5 // pred_region
        // Predicated region
        $region17: #{tpu_custom_call.1} parent=15 // pred_check
          %p127 = pneg %p48
        $region18: #{tpu_custom_call.1} parent=15 // pred_check_branch
          %129 = sbr.rel (%p127) target = $region20
        $region19: #{tpu_custom_call.1} parent=15 // pred_region
          %s130 = sand.u32 %s38, 1
          %s131 = scalar_lea.sflag [#allocation6], %s130
          %s132 = sand.u32 %s38, 1
          %s133 = smul.addr %s132, 16
          %s134 = scalar_lea.vmem [#allocation5], %s133
          %s135 = smul.u32 2, %s22
          %s137 = ssub.s32 256, 256
          %138 = vsyncadd %s131, %s137
          %s139 = smul.addr %s21, 2
          %s140 = sadd.s32 %s135, %s139
          %s141 = smul.addr %s140, 128
          %s142 = scalar_lea.hbm %s0, %s141
          %s144 = sshll.u32 %s134, 4
          %s145 = int_to_ptr.vmem [resolvable:$true] %s144
          %147 = dma.hbm_to_vmem [thread:$0]  %s142, 256, %s145, %s131
        $region20: #{tpu_custom_call.1} parent=15 // pred_fallthru
          _
        // Predicated region
        $region21: #{tpu_custom_call.1} parent=15 // pred_check
          %p148 = pneg %p76
        $region22: #{tpu_custom_call.1} parent=15 // pred_check_branch
          %150 = sbr.rel (%p148) target = $region24
        $region23: #{tpu_custom_call.1} parent=15 // pred_region
          %s151 = sand.u32 %s66, 1
          %s152 = scalar_lea.sflag [#allocation8], %s151
          %s153 = sand.u32 %s66, 1
          %s154 = smul.addr %s153, 8
          %s155 = scalar_lea.vmem [#allocation7], %s154
          %s156 = smul.u32 2, %s22
          %s158 = ssub.s32 128, 128
          %159 = vsyncadd %s152, %s158
          %s160 = smul.addr %s21, 2
          %s161 = sadd.s32 %s156, %s160
          %s162 = smul.addr %s161, 64
          %s163 = scalar_lea.hbm %s1, %s162
          %s165 = sshll.u32 %s155, 4
          %s166 = int_to_ptr.vmem [resolvable:$true] %s165
          %168 = dma.hbm_to_vmem [thread:$0]  %s163, 128, %s166, %s152
        $region24: #{tpu_custom_call.1} parent=15 // pred_fallthru
          _
      $region16: #{tpu_custom_call.1} parent=5 // pred_fallthru
        _
      %p169 = scmp.le.s32.totalorder 1, %s14
      %p170 = scmp.lt.s32.totalorder %s14, 3
      %p171 = pnand %p169, %p170
      %p172 = pneg %p171
      // Predicated region
      $region25: #{tpu_custom_call.1} parent=5 // pred_check
        _
      $region26: #{tpu_custom_call.1} parent=5 // pred_check_branch
        %174 = sbr.rel (%p171) target = $region28
      $region27: #{tpu_custom_call.1} parent=5 // pred_region
        %s175 = ssub.s32 %s14, 1
        %s176 = sand.u32 %s41, 1
        %s177 = scalar_lea.sflag [#allocation6], %s176
        %s178 = sand.u32 %s41, 1
        %s179 = smul.addr %s178, 16
        %s180 = scalar_lea.vmem [#allocation5], %s179
        // Predicated region
        $region29: #{tpu_custom_call.1} parent=27 // pred_check
          %p181 = pneg %p54
        $region30: #{tpu_custom_call.1} parent=27 // pred_check_branch
          %183 = sbr.rel (%p181) target = $region32
        $region31: #{tpu_custom_call.1} parent=27 // pred_region
          %184 = dma.done %s177, 256
        $region32: #{tpu_custom_call.1} parent=27 // pred_fallthru
          _
        %s185 = sand.u32 %s69, 1
        %s186 = scalar_lea.sflag [#allocation8], %s185
        %s187 = sand.u32 %s69, 1
        %s188 = smul.addr %s187, 8
        %s189 = scalar_lea.vmem [#allocation7], %s188
        // Predicated region
        $region33: #{tpu_custom_call.1} parent=27 // pred_check
          %p190 = pneg %p82
        $region34: #{tpu_custom_call.1} parent=27 // pred_check_branch
          %192 = sbr.rel (%p190) target = $region36
        $region35: #{tpu_custom_call.1} parent=27 // pred_region
          %193 = dma.done %s186, 128
        $region36: #{tpu_custom_call.1} parent=27 // pred_fallthru
          _
        %s194 = sand.u32 %s41, 1
        %s195 = scalar_lea.sflag [#allocation6], %s194
        %s196 = sand.u32 %s41, 1
        %s197 = smul.addr %s196, 16
        %s198 = scalar_lea.vmem [#allocation5], %s197
        %p199 = pneg %p54
        %p200 = pneg %p51
        %s201 = sand.u32 %s69, 1
        %s202 = scalar_lea.sflag [#allocation8], %s201
        %s203 = sand.u32 %s69, 1
        %s204 = smul.addr %s203, 8
        %s205 = scalar_lea.vmem [#allocation7], %s204
        %p206 = pneg %p82
        %p207 = pneg %p79
        %p208 = pneg %p108
        %p209 = pneg %p105
        %p210 = scmp.lt.s32.totalorder %s23, 1
        %s211 = scalar_select %p210, %s23, 1
        %s212 = smul.addr %s211, 8
        %s213 = scalar_lea.vmem %s2, %s212
        %s214 = smul.u32 2, %s24
        %s215 = smul.u32 2, %s24
        %p216 = scmp.lt.s32.totalorder %s23, 1
        %s217 = scalar_select %p216, %s23, 1
        %s218 = smul.addr %s217, 8
        %s219 = scalar_lea.vmem %s2, %s218
        %p220 = scmp.eq.s32.totalorder %s24, 0
        // Predicated region
        $region37: #{tpu_custom_call.1} parent=27 // pred_check
          %p221 = pneg %p220
        $region38: #{tpu_custom_call.1} parent=27 // pred_check_branch
          %223 = sbr.rel (%p221) target = $region40
        $region39: #{tpu_custom_call.1} parent=27 // pred_region
          %vm224 = vcmask 7168
          %225 = vst.msk [vmem:[#allocation2] sm:$0xff] %vm224, -inf
          %226 = vst.msk [vmem:[#allocation3] sm:$0xff] %vm224, 0.0
          %vm227 = vcmask 31744
          %228 = vst.msk [vmem:[#allocation4] sm:$0xff] %vm227, 0.0
        $region40: #{tpu_custom_call.1} parent=27 // pred_fallthru
          _
        %v229 = vld [vmem:[%s180] sm:$0xff]
        %v230 = vld [vmem:[%s180 + $0x8] sm:$0xff]
        %v231 = vld [vmem:[#allocation2] sm:$0xff]
        %v232 = vmax.f32 %v229, %v230
        %233 = vmax.xlane.f32.xlu0 %v232
        %v234 = vpop.xlane.xlu0 %233
        %v235 = vmax.f32 %v231, %v234
        %v236 = vsub.f32 %v231, %v235
        %v237 = vmul.f32 %v236, 1.442695
        %v238 = vpow.pop %v237
        %240 = vset.pattern.permute.xlu0 0
        %241 = vperm.xlu0 %240, %v235
        %v242 = vpop.permute.xlu0 %241
        %v244 = vsub.f32 %v229, %v242
        %v245 = vsub.f32 %v230, %v242
        %v246 = vmul.f32 %v244, 1.442695
        %v247 = vpow.pop %v246
        %v248 = vmul.f32 %v245, 1.442695
        %v249 = vpow.pop %v248
        %v250 = vld [vmem:[#allocation3] sm:$0xff]
        %v251 = vmul.f32 %v238, %v250
        %v252 = vadd.f32 %v247, %v249
        %253 = vadd.xlane.f32.xlu0 %v252
        %v254 = vpop.xlane.xlu0 %253
        %v255 = vadd.f32 %v251, %v254
        %vm256 = vcmask 7168
        %257 = vst.msk [vmem:[#allocation3] sm:$0xff] %vm256, %v255
        %v258 = vld [vmem:[%s189] sm:$0xff]
        %v259 = vld [vmem:[#allocation4] sm:$0xff]
        %261 = vset.pattern.permute.xlu0 0
        %262 = vperm.xlu0 %261, %v238
        %v263 = vpop.permute.xlu0 %262
        %v265 = vmul.f32 %v263, %v259
        %v267 = vcombine.high %v258, %v258
        %269 = vmatprep.subr.mxu0 %v267
        %270 = vmatpush1.xpose.msra.mxu0 %v258
        %271 = vmatprep.subr.mxu0 0.0
        %272 = vmatpush1.xpose.msra.mxu0 0.0
        %273 = vmatprep.subr.mxu0 0.0
        %274 = vmatpush1.xpose.msra.mxu0 0.0
        %275 = vmatprep.subr.mxu0 0.0
        %276 = vmatpush1.xpose.msra.mxu0 0.0
        %277 = vmatprep.subr.mxu0 0.0
        %278 = vmatpush1.xpose.msra.mxu0 0.0
        %279 = vmatprep.subr.mxu0 0.0
        %280 = vmatpush1.xpose.msra.mxu0 0.0
        %281 = vmatprep.subr.mxu0 0.0
        %282 = vmatpush1.xpose.msra.mxu0 0.0
        %283 = vmatprep.subr.mxu0 0.0
        %284 = vmatpush1.xpose.msra.mxu0 0.0
        %285 = vmatprep.subr.mxu0 0.0
        %286 = vmatpush1.xpose.msra.mxu0 0.0
        %287 = vmatprep.subr.mxu0 0.0
        %288 = vmatpush1.xpose.msra.mxu0 0.0
        %289 = vmatprep.subr.mxu0 0.0
        %290 = vmatpush1.xpose.msra.mxu0 0.0
        %291 = vmatprep.subr.mxu0 0.0
        %292 = vmatpush1.xpose.msra.mxu0 0.0
        %293 = vmatprep.subr.mxu0 0.0
        %294 = vmatpush1.xpose.msra.mxu0 0.0
        %295 = vmatprep.subr.mxu0 0.0
        %296 = vmatpush1.xpose.msra.mxu0 0.0
        %297 = vmatprep.subr.mxu0 0.0
        %298 = vmatpush1.xpose.msra.mxu0 0.0
        %299 = vmatprep.subr.mxu0 0.0
        %300 = vmatpush1.xpose.msra.mxu0 0.0
        %301 = vmatprep.subr.mxu0 0.0
        %302 = vmatpush1.xpose.msra.mxu0 0.0
        %303 = vmatprep.subr.mxu0 0.0
        %304 = vmatpush1.xpose.msra.mxu0 0.0
        %305 = vmatprep.subr.mxu0 0.0
        %306 = vmatpush1.xpose.msra.mxu0 0.0
        %307 = vmatprep.subr.mxu0 0.0
        %308 = vmatpush1.xpose.msra.mxu0 0.0
        %309 = vmatprep.subr.mxu0 0.0
        %310 = vmatpush1.xpose.msra.mxu0 0.0
        %311 = vmatprep.subr.mxu0 0.0
        %312 = vmatpush1.xpose.msra.mxu0 0.0
        %313 = vmatprep.subr.mxu0 0.0
        %314 = vmatpush1.xpose.msra.mxu0 0.0
        %315 = vmatprep.subr.mxu0 0.0
        %316 = vmatpush1.xpose.msra.mxu0 0.0
        %317 = vmatprep.subr.mxu0 0.0
        %318 = vmatpush1.xpose.msra.mxu0 0.0
        %319 = vmatprep.subr.mxu0 0.0
        %320 = vmatpush1.xpose.msra.mxu0 0.0
        %321 = vmatprep.subr.mxu0 0.0
        %322 = vmatpush1.xpose.msra.mxu0 0.0
        %323 = vmatprep.subr.mxu0 0.0
        %324 = vmatpush1.xpose.msra.mxu0 0.0
        %325 = vmatprep.subr.mxu0 0.0
        %326 = vmatpush1.xpose.msra.mxu0 0.0
        %327 = vmatprep.subr.mxu0 0.0
        %328 = vmatpush1.xpose.msra.mxu0 0.0
        %329 = vmatprep.subr.mxu0 0.0
        %330 = vmatpush1.xpose.msra.mxu0 0.0
        %331 = vmatprep.subr.mxu0 0.0
        %332 = vmatpush1.xpose.msra.mxu0 0.0
        %333 = vmatprep.mubr.f32.mxu0 %v249
        %334 = vmatmul.mubr.f32.gmra.mrb[0].mxu0 %v247
        %v335 = vpop.f32.mrb[0].mxu0
        %v336 = vadd.f32 0.0, %v335
        %v337 = vpop.f32.mrb[0].mxu0
        %338 = vdwg.mxu0
        %v339 = vadd.f32 %v265, %v336
        %vm340 = vcmask 31744
        %341 = vst.msk [vmem:[#allocation4] sm:$0xff] %vm340, %v339
        %342 = vst.msk [vmem:[#allocation2] sm:$0xff] %vm256, %v235
        // Predicated region
        $region41: #{tpu_custom_call.1} parent=27 // pred_check
          %p343 = pneg %p220
        $region42: #{tpu_custom_call.1} parent=27 // pred_check_branch
          %345 = sbr.rel (%p343) target = $region44
        $region43: #{tpu_custom_call.1} parent=27 // pred_region
          %v346 = vld [vmem:[#allocation3] sm:$0xff]
          %v347 = vrcp.pop %v346
          %v348 = vld [vmem:[#allocation4] sm:$0xff]
          %350 = vset.pattern.permute.xlu0 0
          %351 = vperm.xlu0 %350, %v347
          %v352 = vpop.permute.xlu0 %351
          %v354 = vmul.f32 %v348, %v352
          %355 = vst.msk [vmem:[%s219] sm:$0xff] %vm340, %v354
        $region44: #{tpu_custom_call.1} parent=27 // pred_fallthru
          _
        %p356 = scmp.lt.s32.totalorder %s23, 1
        %s357 = scalar_select %p356, %s23, 1
        %s358 = smul.addr %s357, 8
        %s359 = scalar_lea.vmem %s2, %s358
        // Predicated region
        $region45: #{tpu_custom_call.1} parent=27 // pred_check
          %p360 = pneg %p105
        $region46: #{tpu_custom_call.1} parent=27 // pred_check_branch
          %362 = sbr.rel (%p360) target = $region48
        $region47: #{tpu_custom_call.1} parent=27 // pred_region
          _
        $region48: #{tpu_custom_call.1} parent=27 // pred_fallthru
          _
      $region28: #{tpu_custom_call.1} parent=5 // pred_fallthru
        _
      %p363 = scmp.le.s32.totalorder 2, %s14
      // Predicated region
      $region49: #{tpu_custom_call.1} parent=5 // pred_check
        %p364 = pneg %p363
      $region50: #{tpu_custom_call.1} parent=5 // pred_check_branch
        %366 = sbr.rel (%p364) target = $region52
      $region51: #{tpu_custom_call.1} parent=5 // pred_region
        %s367 = ssub.s32 %s14, 2
        // Predicated region
        $region53: #{tpu_custom_call.1} parent=51 // pred_check
          %p368 = pneg %p111
        $region54: #{tpu_custom_call.1} parent=51 // pred_check_branch
          %370 = sbr.rel (%p368) target = $region56
        $region55: #{tpu_custom_call.1} parent=51 // pred_region
          %p371 = scmp.lt.s32.totalorder %s25, 1
          %s372 = scalar_select %p371, %s25, 1
          %s373 = smul.addr %s372, 8
          %s374 = scalar_lea.vmem %s2, %s373
        $region56: #{tpu_custom_call.1} parent=51 // pred_fallthru
          _
      $region52: #{tpu_custom_call.1} parent=5 // pred_fallthru
        _
    $region6: #{tpu_custom_call.1} parent=1 // loop_footer
      %s18 = sadd.s32 1, %s14
    $region7: #{tpu_custom_call.1} parent=1 // loop_footer_branch
      %13 = sbr.rel target = $region3
    $region8: #{tpu_custom_call.1} parent=1 // loop_exit
      _
    %375 = vsyncpa [#allocation6], 1
    %s376 = scalar_lea.sflag [#allocation6], 1
    %377 = vsyncpa %s376, 1
    %378 = vsyncpa [#allocation8], 1
    %s379 = scalar_lea.sflag [#allocation8], 1
    %380 = vsyncpa %s379, 1

</llo_original>
